<compile_context>
chip_gen: v7x
topology: tpu7x:2x2x1
jax: 0.10.0
libtpu: 0.0.40
codegen_flags: <defaults>
</compile_context>

<pallas_src>
import jax
import jax.numpy as jnp
from jax.experimental import pallas as pl
from jax.experimental.pallas import tpu as pltpu

HIDDEN = 128
ROW_ALIGN = 8              # f32 sublane granularity for x / out blocks
TM_MAX = 2048              # max batch-tile rows (~2-3 MiB/step << 64 MiB VMEM)
MIN_ROWS_FOR_SPLIT = 256   # force >=2 tiles (v7x dual-TC) once batch is this big


def _cdiv(a, b):
    return -(-a // b)


def _round_up(n, m):
    return ((n + m - 1) // m) * m


def _mlp_kernel(x_ref, w1_ref, b1_ref, w2_ref, b2_ref,
                w3_ref, b3_ref, w4_ref, b4_ref, o_ref):
    """Whole 4-layer MLP for one (tm, in_size) batch tile.

    Weights/biases use constant index_maps so they stay VMEM-resident across
    grid steps.  bf16 x bf16 MXU matmuls with f32 accumulation; bias + ReLU
    run on the f32 accumulator (v5e-safe: no bf16 VPU there).
    """
    # x arrives f32 (single HBM pass) and is cast to bf16 in-kernel.
    h = jnp.dot(x_ref[...].astype(jnp.bfloat16), w1_ref[...],
                preferred_element_type=jnp.float32)
    h = jnp.maximum(h + b1_ref[...], 0.0)

    h = jnp.dot(h.astype(jnp.bfloat16), w2_ref[...],
                preferred_element_type=jnp.float32)
    h = jnp.maximum(h + b2_ref[...], 0.0)

    h = jnp.dot(h.astype(jnp.bfloat16), w3_ref[...],
                preferred_element_type=jnp.float32)
    h = jnp.maximum(h + b3_ref[...], 0.0)

    # Final layer: unpadded [tm, out_size] store -> minimal HBM writeback
    # (16x fewer bytes than a 128-lane zero-padded f32 store for out_size=8).
    h = jnp.dot(h.astype(jnp.bfloat16), w4_ref[...],
                preferred_element_type=jnp.float32)
    o_ref[...] = (h + b4_ref[...]).astype(o_ref.dtype)


def behavior_cloning_lv2(x, params, *, tm_max=TM_MAX):
    """x: [B, input_size] float32.  params: kernel-ready dict (see init_params):
    bf16 weights stored transposed as [in, out], f32 biases as [1, out]."""
    B, in_size = x.shape
    out_size = params["w4"].shape[1]

    w1, w2, w3, w4 = params["w1"], params["w2"], params["w3"], params["w4"]
    b1, b2, b3, b4 = params["b1"], params["b2"], params["b3"], params["b4"]

    # ---- batch tiling ------------------------------------------------------
    b_aligned = _round_up(B, ROW_ALIGN)
    num_tiles = _cdiv(b_aligned, tm_max)
    # v7x: guarantee >=2 tiles for non-tiny batches so ("parallel",) can shard
    # batch tiles across both TensorCores (no-op on single-TC v5e/v6e).
    if b_aligned >= MIN_ROWS_FOR_SPLIT and num_tiles < 2:
        num_tiles = 2
    # Near-equal tiles: avoids padding almost a whole extra tile of writeback.
    tm = _round_up(_cdiv(b_aligned, num_tiles), ROW_ALIGN)
    b_pad = tm * num_tiles
    if b_pad != B:
        x = jnp.pad(x, ((0, b_pad - B), (0, 0)))
    grid = (num_tiles,)

    def resident(arr):
        # Constant index_map -> block stays VMEM-resident across grid steps.
        return pl.BlockSpec(arr.shape, lambda i: (0, 0))

    nbytes = lambda a: a.size * a.dtype.itemsize
    weight_bytes = sum(nbytes(a) for a in (w1, b1, w2, b2, w3, b3, w4, b4))
    cost = pl.CostEstimate(
        flops=2 * b_pad * (in_size * HIDDEN + 2 * HIDDEN * HIDDEN
                           + HIDDEN * out_size),
        transcendentals=0,
        bytes_accessed=b_pad * in_size * 4 + weight_bytes + b_pad * out_size * 4,
    )

    out = pl.pallas_call(
        _mlp_kernel,
        out_shape=jax.ShapeDtypeStruct((b_pad, out_size), jnp.float32),
        grid_spec=pltpu.PrefetchScalarGridSpec(
            num_scalar_prefetch=0,
            grid=grid,
            in_specs=[
                pl.BlockSpec((tm, in_size), lambda i: (i, 0)),   # batch-tiled x
                resident(w1), resident(b1),
                resident(w2), resident(b2),
                resident(w3), resident(b3),
                resident(w4), resident(b4),
            ],
            out_specs=pl.BlockSpec((tm, out_size), lambda i: (i, 0)),
        ),
        compiler_params=pltpu.CompilerParams(
            dimension_semantics=("parallel",),   # 2-TC batch sharding on v7x
        ),
        cost_estimate=cost,
    )(x, w1, b1, w2, b2, w3, b3, w4, b4)

    # Padded batch rows (zero inputs) are sliced away here.
    return out[:B]


def init_params(key, input_size, output_size, hidden=HIDDEN):
    """One-time parameter prep (done outside the per-call path): weights are
    stored transposed as [in, out] and already cast to bf16 (MXU-native);
    biases stay f32 with shape [1, out].  Matches nn.Linear default init."""
    ks = jax.random.split(key, 8)

    def lin(kw, kb, fan_in, fan_out):
        bound = 1.0 / (fan_in ** 0.5)
        w = jax.random.uniform(kw, (fan_in, fan_out), jnp.float32, -bound, bound)
        b = jax.random.uniform(kb, (1, fan_out), jnp.float32, -bound, bound)
        return w.astype(jnp.bfloat16), b

    w1, b1 = lin(ks[0], ks[1], input_size, hidden)
    w2, b2 = lin(ks[2], ks[3], hidden, hidden)
    w3, b3 = lin(ks[4], ks[5], hidden, hidden)
    w4, b4 = lin(ks[6], ks[7], hidden, output_size)
    return dict(w1=w1, b1=b1, w2=w2, b2=b2, w3=w3, b3=b3, w4=w4, b4=b4)


def _reference(x, p):
    """Pure-JAX reference with the same bf16-in / f32-accumulate math.
    NOTE: bf16 weights/activations will diverge from a pure-f32 PyTorch
    forward beyond ~1e-2; the 2e-2 tolerance below is load-bearing."""
    bf16 = jnp.bfloat16

    def lin(h, w, b):
        return jnp.dot(h.astype(bf16), w.astype(bf16),
                       preferred_element_type=jnp.float32) + b

    h = jnp.maximum(lin(x, p["w1"], p["b1"]), 0.0)
    h = jnp.maximum(lin(h, p["w2"], p["b2"]), 0.0)
    h = jnp.maximum(lin(h, p["w3"], p["b3"]), 0.0)
    return lin(h, p["w4"], p["b4"])


if __name__ == "__main__":
    key = jax.random.PRNGKey(0)
    batch, input_size, output_size = 64, 32, 8

    k_x, k_p = jax.random.split(key)
    x = jax.random.normal(k_x, (batch, input_size), jnp.float32)
    params = init_params(k_p, input_size, output_size)

    out = behavior_cloning_lv2(x, params)
    out = jax.block_until_ready(out)

    ref = _reference(x, params)
    assert out.shape == (batch, output_size)
    assert out.dtype == jnp.float32
    assert jnp.allclose(out, ref, atol=2e-2, rtol=2e-2), "mismatch vs reference"

    print("KERNEL_OK")
</pallas_src>

<mosaic_0001>
module attributes {stable_mosaic.version = 11 : i64} {
  func.func @_mlp_kernel(%arg0: i32, %arg1: memref<64x32xf32, #tpu.memory_space<vmem>>, %arg2: memref<32x128xbf16, #tpu.memory_space<vmem>>, %arg3: memref<1x128xf32, #tpu.memory_space<vmem>>, %arg4: memref<128x128xbf16, #tpu.memory_space<vmem>>, %arg5: memref<1x128xf32, #tpu.memory_space<vmem>>, %arg6: memref<128x128xbf16, #tpu.memory_space<vmem>>, %arg7: memref<1x128xf32, #tpu.memory_space<vmem>>, %arg8: memref<128x8xbf16, #tpu.memory_space<vmem>>, %arg9: memref<1x8xf32, #tpu.memory_space<vmem>>, %arg10: memref<64x8xf32, #tpu.memory_space<vmem>>) attributes {dimension_semantics = [#tpu.dimension_semantics<parallel>], iteration_bounds = array<i64: 1>, scalar_prefetch = 0 : i64, scratch_operands = 0 : i64, tpu.core_type = #tpu.core_type<tc>, window_params = [{transform_indices = @transform_0, window_bounds = array<i64: 64, 32>}, {pipeline_mode = #tpu.pipeline_mode<synchronous>, transform_indices = @transform_1, window_bounds = array<i64: 32, 128>}, {pipeline_mode = #tpu.pipeline_mode<synchronous>, transform_indices = @transform_2, window_bounds = array<i64: 1, 128>}, {pipeline_mode = #tpu.pipeline_mode<synchronous>, transform_indices = @transform_3, window_bounds = array<i64: 128, 128>}, {pipeline_mode = #tpu.pipeline_mode<synchronous>, transform_indices = @transform_4, window_bounds = array<i64: 1, 128>}, {pipeline_mode = #tpu.pipeline_mode<synchronous>, transform_indices = @transform_5, window_bounds = array<i64: 128, 128>}, {pipeline_mode = #tpu.pipeline_mode<synchronous>, transform_indices = @transform_6, window_bounds = array<i64: 1, 128>}, {pipeline_mode = #tpu.pipeline_mode<synchronous>, transform_indices = @transform_7, window_bounds = array<i64: 128, 8>}, {pipeline_mode = #tpu.pipeline_mode<synchronous>, transform_indices = @transform_8, window_bounds = array<i64: 1, 8>}, {transform_indices = @transform_9, window_bounds = array<i64: 64, 8>}]} {
    %c0 = arith.constant 0 : index
    %c0_0 = arith.constant 0 : index
    %0 = vector.load %arg1[%c0, %c0_0] : memref<64x32xf32, #tpu.memory_space<vmem>>, vector<64x32xf32>
    %1 = arith.truncf %0 : vector<64x32xf32> to vector<64x32xbf16>
    %c0_1 = arith.constant 0 : index
    %c0_2 = arith.constant 0 : index
    %2 = vector.load %arg2[%c0_1, %c0_2] : memref<32x128xbf16, #tpu.memory_space<vmem>>, vector<32x128xbf16>
    %cst = arith.constant dense<0.000000e+00> : vector<64x128xf32>
    %3 = tpu.matmul %1, %2, %cst {dimension_numbers = #tpu.dot_dimension_numbers<[1], [0], [0], [1], [0, 0, 1, 1], [], []>} : vector<64x32xbf16>, vector<32x128xbf16>, vector<64x128xf32> -> vector<64x128xf32>
    %c0_3 = arith.constant 0 : index
    %c0_4 = arith.constant 0 : index
    %4 = vector.load %arg3[%c0_3, %c0_4] : memref<1x128xf32, #tpu.memory_space<vmem>>, vector<1x128xf32>
    %5 = vector.broadcast %4 : vector<1x128xf32> to vector<64x128xf32>
    %6 = arith.addf %3, %5 : vector<64x128xf32>
    %cst_5 = arith.constant 0.000000e+00 : f32
    %7 = vector.broadcast %cst_5 : f32 to vector<64x128xf32>
    %8 = arith.maximumf %6, %7 : vector<64x128xf32>
    %9 = arith.truncf %8 : vector<64x128xf32> to vector<64x128xbf16>
    %c0_6 = arith.constant 0 : index
    %c0_7 = arith.constant 0 : index
    %10 = vector.load %arg4[%c0_6, %c0_7] : memref<128x128xbf16, #tpu.memory_space<vmem>>, vector<128x128xbf16>
    %cst_8 = arith.constant dense<0.000000e+00> : vector<64x128xf32>
    %11 = tpu.matmul %9, %10, %cst_8 {dimension_numbers = #tpu.dot_dimension_numbers<[1], [0], [0], [1], [0, 0, 1, 1], [], []>} : vector<64x128xbf16>, vector<128x128xbf16>, vector<64x128xf32> -> vector<64x128xf32>
    %c0_9 = arith.constant 0 : index
    %c0_10 = arith.constant 0 : index
    %12 = vector.load %arg5[%c0_9, %c0_10] : memref<1x128xf32, #tpu.memory_space<vmem>>, vector<1x128xf32>
    %13 = vector.broadcast %12 : vector<1x128xf32> to vector<64x128xf32>
    %14 = arith.addf %11, %13 : vector<64x128xf32>
    %cst_11 = arith.constant 0.000000e+00 : f32
    %15 = vector.broadcast %cst_11 : f32 to vector<64x128xf32>
    %16 = arith.maximumf %14, %15 : vector<64x128xf32>
    %17 = arith.truncf %16 : vector<64x128xf32> to vector<64x128xbf16>
    %c0_12 = arith.constant 0 : index
    %c0_13 = arith.constant 0 : index
    %18 = vector.load %arg6[%c0_12, %c0_13] : memref<128x128xbf16, #tpu.memory_space<vmem>>, vector<128x128xbf16>
    %cst_14 = arith.constant dense<0.000000e+00> : vector<64x128xf32>
    %19 = tpu.matmul %17, %18, %cst_14 {dimension_numbers = #tpu.dot_dimension_numbers<[1], [0], [0], [1], [0, 0, 1, 1], [], []>} : vector<64x128xbf16>, vector<128x128xbf16>, vector<64x128xf32> -> vector<64x128xf32>
    %c0_15 = arith.constant 0 : index
    %c0_16 = arith.constant 0 : index
    %20 = vector.load %arg7[%c0_15, %c0_16] : memref<1x128xf32, #tpu.memory_space<vmem>>, vector<1x128xf32>
    %21 = vector.broadcast %20 : vector<1x128xf32> to vector<64x128xf32>
    %22 = arith.addf %19, %21 : vector<64x128xf32>
    %cst_17 = arith.constant 0.000000e+00 : f32
    %23 = vector.broadcast %cst_17 : f32 to vector<64x128xf32>
    %24 = arith.maximumf %22, %23 : vector<64x128xf32>
    %25 = arith.truncf %24 : vector<64x128xf32> to vector<64x128xbf16>
    %c0_18 = arith.constant 0 : index
    %c0_19 = arith.constant 0 : index
    %26 = vector.load %arg8[%c0_18, %c0_19] : memref<128x8xbf16, #tpu.memory_space<vmem>>, vector<128x8xbf16>
    %cst_20 = arith.constant dense<0.000000e+00> : vector<64x8xf32>
    %27 = tpu.matmul %25, %26, %cst_20 {dimension_numbers = #tpu.dot_dimension_numbers<[1], [0], [0], [1], [0, 0, 1, 1], [], []>} : vector<64x128xbf16>, vector<128x8xbf16>, vector<64x8xf32> -> vector<64x8xf32>
    %c0_21 = arith.constant 0 : index
    %c0_22 = arith.constant 0 : index
    %28 = vector.load %arg9[%c0_21, %c0_22] : memref<1x8xf32, #tpu.memory_space<vmem>>, vector<1x8xf32>
    %29 = vector.broadcast %28 : vector<1x8xf32> to vector<64x8xf32>
    %30 = arith.addf %27, %29 : vector<64x8xf32>
    %c0_23 = arith.constant 0 : index
    %c0_24 = arith.constant 0 : index
    %31 = vector.load %arg10[%c0_23, %c0_24] : memref<64x8xf32, #tpu.memory_space<vmem>>, vector<64x8xf32>
    tpu.vector_store %arg10[%c0_23, %c0_24], %30 {strides = array<i32>} : memref<64x8xf32, #tpu.memory_space<vmem>>, vector<64x8xf32>,
    return
  }
  func.func @transform_0(%arg0: i32) -> (i32, i32) {
    %c0_i32 = arith.constant 0 : i32
    %c0_i32_0 = arith.constant 0 : i32
    return %arg0, %c0_i32 : i32, i32
  }
  func.func @transform_1(%arg0: i32) -> (i32, i32) {
    %c0_i32 = arith.constant 0 : i32
    %c0_i32_0 = arith.constant 0 : i32
    %c0_i32_1 = arith.constant 0 : i32
    return %c0_i32, %c0_i32_0 : i32, i32
  }
  func.func @transform_2(%arg0: i32) -> (i32, i32) {
    %c0_i32 = arith.constant 0 : i32
    %c0_i32_0 = arith.constant 0 : i32
    %c0_i32_1 = arith.constant 0 : i32
    return %c0_i32, %c0_i32_0 : i32, i32
  }
  func.func @transform_3(%arg0: i32) -> (i32, i32) {
    %c0_i32 = arith.constant 0 : i32
    %c0_i32_0 = arith.constant 0 : i32
    %c0_i32_1 = arith.constant 0 : i32
    return %c0_i32, %c0_i32_0 : i32, i32
  }
  func.func @transform_4(%arg0: i32) -> (i32, i32) {
    %c0_i32 = arith.constant 0 : i32
    %c0_i32_0 = arith.constant 0 : i32
    %c0_i32_1 = arith.constant 0 : i32
    return %c0_i32, %c0_i32_0 : i32, i32
  }
  func.func @transform_5(%arg0: i32) -> (i32, i32) {
    %c0_i32 = arith.constant 0 : i32
    %c0_i32_0 = arith.constant 0 : i32
    %c0_i32_1 = arith.constant 0 : i32
    return %c0_i32, %c0_i32_0 : i32, i32
  }
  func.func @transform_6(%arg0: i32) -> (i32, i32) {
    %c0_i32 = arith.constant 0 : i32
    %c0_i32_0 = arith.constant 0 : i32
    %c0_i32_1 = arith.constant 0 : i32
    return %c0_i32, %c0_i32_0 : i32, i32
  }
  func.func @transform_7(%arg0: i32) -> (i32, i32) {
    %c0_i32 = arith.constant 0 : i32
    %c0_i32_0 = arith.constant 0 : i32
    %c0_i32_1 = arith.constant 0 : i32
    return %c0_i32, %c0_i32_0 : i32, i32
  }
  func.func @transform_8(%arg0: i32) -> (i32, i32) {
    %c0_i32 = arith.constant 0 : i32
    %c0_i32_0 = arith.constant 0 : i32
    %c0_i32_1 = arith.constant 0 : i32
    return %c0_i32, %c0_i32_0 : i32, i32
  }
  func.func @transform_9(%arg0: i32) -> (i32, i32) {
    %c0_i32 = arith.constant 0 : i32
    %c0_i32_0 = arith.constant 0 : i32
    return %arg0, %c0_i32 : i32, i32
  }
}

</mosaic_0001>

<llo_original>
// kernel: tpu_custom_call.1
$region0: #{tpu_custom_call.1}
  #allocation0 [shape = 'u32[]', space=smem, size = 0x4, offset = 0x4, fixed_abs, tag = 'smem constant byte address 0x4 - core index']
  #allocation1 [shape = 'u32[144,128]{1,0:T(1,128)}', space=vmem, size = 0x12000, scoped, tag = 'internal scratch']
  %s0 = inlined_call_operand.vmem [shape: f32[64,32], index: 0, kind: input, shape index: {}]
  %s1 = inlined_call_operand.vmem [shape: bf16[32,128], index: 1, kind: input, shape index: {}]
  %s2 = inlined_call_operand.vmem [shape: f32[1,128], index: 2, kind: input, shape index: {}]
  %s3 = inlined_call_operand.vmem [shape: bf16[128,128], index: 3, kind: input, shape index: {}]
  %s4 = inlined_call_operand.vmem [shape: f32[1,128], index: 4, kind: input, shape index: {}]
  %s5 = inlined_call_operand.vmem [shape: bf16[128,128], index: 5, kind: input, shape index: {}]
  %s6 = inlined_call_operand.vmem [shape: f32[1,128], index: 6, kind: input, shape index: {}]
  %s7 = inlined_call_operand.vmem [shape: bf16[128,8], index: 7, kind: input, shape index: {}]
  %s8 = inlined_call_operand.vmem [shape: f32[1,8], index: 8, kind: input, shape index: {}]
  %s9 = inlined_call_operand.vmem [shape: f32[64,8], index: 9, kind: output, shape index: {}]
  %s10 = sld [smem:[#allocation0]]
  $region46: #{tpu_custom_call.1} parent=0
    _
  %s12 = ssub.s32 1, %s10
  %s13 = scalar_select 0, %s12, %s10
  // Predicated region
  $region2: #{tpu_custom_call.1} parent=0 // pred_check
    _
  $region3: #{tpu_custom_call.1} parent=0 // pred_check_branch
    %15 = sbr.rel (0) target = $region5
  $region4: #{tpu_custom_call.1} parent=0 // pred_region
    _
  $region5: #{tpu_custom_call.1} parent=0 // pred_fallthru
    _
  // Predicated region
  $region6: #{tpu_custom_call.1} parent=0 // pred_check
    _
  $region7: #{tpu_custom_call.1} parent=0 // pred_check_branch
    %17 = sbr.rel (0) target = $region9
  $region8: #{tpu_custom_call.1} parent=0 // pred_region
    _
  $region9: #{tpu_custom_call.1} parent=0 // pred_fallthru
    _
  // Predicated region
  $region10: #{tpu_custom_call.1} parent=0 // pred_check
    _
  $region11: #{tpu_custom_call.1} parent=0 // pred_check_branch
    %19 = sbr.rel (0) target = $region13
  $region12: #{tpu_custom_call.1} parent=0 // pred_region
    _
  $region13: #{tpu_custom_call.1} parent=0 // pred_fallthru
    _
  // Predicated region
  $region14: #{tpu_custom_call.1} parent=0 // pred_check
    _
  $region15: #{tpu_custom_call.1} parent=0 // pred_check_branch
    %21 = sbr.rel (0) target = $region17
  $region16: #{tpu_custom_call.1} parent=0 // pred_region
    _
  $region17: #{tpu_custom_call.1} parent=0 // pred_fallthru
    _
  // Predicated region
  $region18: #{tpu_custom_call.1} parent=0 // pred_check
    _
  $region19: #{tpu_custom_call.1} parent=0 // pred_check_branch
    %23 = sbr.rel (0) target = $region21
  $region20: #{tpu_custom_call.1} parent=0 // pred_region
    _
  $region21: #{tpu_custom_call.1} parent=0 // pred_fallthru
    _
  // Predicated region
  $region22: #{tpu_custom_call.1} parent=0 // pred_check
    _
  $region23: #{tpu_custom_call.1} parent=0 // pred_check_branch
    %25 = sbr.rel (0) target = $region25
  $region24: #{tpu_custom_call.1} parent=0 // pred_region
    _
  $region25: #{tpu_custom_call.1} parent=0 // pred_fallthru
    _
  // Predicated region
  $region26: #{tpu_custom_call.1} parent=0 // pred_check
    _
  $region27: #{tpu_custom_call.1} parent=0 // pred_check_branch
    %27 = sbr.rel (0) target = $region29
  $region28: #{tpu_custom_call.1} parent=0 // pred_region
    _
  $region29: #{tpu_custom_call.1} parent=0 // pred_fallthru
    _
  // Predicated region
  $region30: #{tpu_custom_call.1} parent=0 // pred_check
    _
  $region31: #{tpu_custom_call.1} parent=0 // pred_check_branch
    %29 = sbr.rel (0) target = $region33
  $region32: #{tpu_custom_call.1} parent=0 // pred_region
    _
  $region33: #{tpu_custom_call.1} parent=0 // pred_fallthru
    _
  // Predicated region
  $region34: #{tpu_custom_call.1} parent=0 // pred_check
    _
  $region35: #{tpu_custom_call.1} parent=0 // pred_check_branch
    %31 = sbr.rel (0) target = $region37
  $region36: #{tpu_custom_call.1} parent=0 // pred_region
    _
  $region37: #{tpu_custom_call.1} parent=0 // pred_fallthru
    _
  %v33 = vld [vmem:[%s0] sm:$0xff]
  %v34 = vld [vmem:[%s0 + $0x8] sm:$0xff]
  %v35 = vld [vmem:[%s0 + $0x10] sm:$0xff]
  %v36 = vld [vmem:[%s0 + $0x18] sm:$0xff]
  %v37 = vld [vmem:[%s0 + $0x20] sm:$0xff]
  %v38 = vld [vmem:[%s0 + $0x28] sm:$0xff]
  %v39 = vld [vmem:[%s0 + $0x30] sm:$0xff]
  %v40 = vld [vmem:[%s0 + $0x38] sm:$0xff]
  %v41 = vpack.c.bf16 %v34, %v33
  %v42 = vpack.c.bf16 %v36, %v35
  %v43 = vpack.c.bf16 %v38, %v37
  %v44 = vpack.c.bf16 %v40, %v39
  %v45 = vld [vmem:[%s1] sm:$0xf]
  %v46 = vld [vmem:[%s1 + $0x4] sm:$0xf]
  %v47 = vld [vmem:[%s1 + $0x8] sm:$0xf]
  %v48 = vld [vmem:[%s1 + $0xc] sm:$0xf]
  %v49 = vld [vmem:[%s2] sm:$0x1]
  %v51 = vlaneseq
  %v52 = vshrl.u32 %v51, 7
  %v53 = vsub.s32 0, %v52
  %v54 = vrot.slane %v49, %v53
  %v60 = vunpack.c.l.b16 %v45
  %v61 = vunpack.c.l.b16 %v46
  %v62 = vunpack.c.l.b16 %v47
  %v63 = vunpack.c.l.b16 %v48
  %v64 = vpack.c.b16 %v61, %v60
  %v65 = vpack.c.b16 %v63, %v62
  %vm68 = vcmask 261120
  %v70 = vsel %vm68, %v41, 0
  %v73 = vsel %vm68, %v42, 0
  %v76 = vsel %vm68, %v43, 0
  %v79 = vsel %vm68, %v44, 0
  %81 = vmatprep.subr.bf16.mxu0 0
  %82 = vmatpush1.bf16.msra.mxu0 %v64
  %83 = vmatprep.subr.bf16.mxu0 0
  %84 = vmatpush1.bf16.msra.mxu0 %v65
  %85 = vmatprep.subr.bf16.mxu0 0
  %86 = vmatpush1.bf16.msra.mxu0 0
  %87 = vmatprep.subr.bf16.mxu0 0
  %88 = vmatpush1.bf16.msra.mxu0 0
  %89 = vmatprep.subr.bf16.mxu0 0
  %90 = vmatpush1.bf16.msra.mxu0 0
  %91 = vmatprep.subr.bf16.mxu0 0
  %92 = vmatpush1.bf16.msra.mxu0 0
  %93 = vmatprep.subr.bf16.mxu0 0
  %94 = vmatpush1.bf16.msra.mxu0 0
  %95 = vmatprep.subr.bf16.mxu0 0
  %96 = vmatpush1.bf16.msra.mxu0 0
  %97 = vmatprep.subr.bf16.mxu0 0
  %98 = vmatpush1.bf16.msra.mxu0 0
  %99 = vmatprep.subr.bf16.mxu0 0
  %100 = vmatpush1.bf16.msra.mxu0 0
  %101 = vmatprep.subr.bf16.mxu0 0
  %102 = vmatpush1.bf16.msra.mxu0 0
  %103 = vmatprep.subr.bf16.mxu0 0
  %104 = vmatpush1.bf16.msra.mxu0 0
  %105 = vmatprep.subr.bf16.mxu0 0
  %106 = vmatpush1.bf16.msra.mxu0 0
  %107 = vmatprep.subr.bf16.mxu0 0
  %108 = vmatpush1.bf16.msra.mxu0 0
  %109 = vmatprep.subr.bf16.mxu0 0
  %110 = vmatpush1.bf16.msra.mxu0 0
  %111 = vmatprep.subr.bf16.mxu0 0
  %112 = vmatpush1.bf16.msra.mxu0 0
  %113 = vmatprep.mubr.bf16.mxu0 0
  %114 = vmatmul.mubr.bf16.gmra.mrb[0].mxu0 %v70
  %v115 = vpop.f32.mrb[0].mxu0
  %v116 = vadd.f32 %v54, %v115
  %v117 = vpop.f32.mrb[0].mxu0
  %v118 = vpop.f32.mrb[0].mxu0
  %v119 = vadd.f32 %v54, %v118
  %v120 = vpop.f32.mrb[0].mxu0
  %121 = vmatprep.mubr.bf16.mxu0 0
  %122 = vmatmul.mubr.bf16.gmra.mrb[0].mxu0 %v73
  %v123 = vpop.f32.mrb[0].mxu0
  %v124 = vadd.f32 %v54, %v123
  %v125 = vpop.f32.mrb[0].mxu0
  %v126 = vpop.f32.mrb[0].mxu0
  %v127 = vadd.f32 %v54, %v126
  %v128 = vpop.f32.mrb[0].mxu0
  %129 = vmatprep.mubr.bf16.mxu0 0
  %130 = vmatmul.mubr.bf16.gmra.mrb[0].mxu0 %v76
  %v131 = vpop.f32.mrb[0].mxu0
  %v132 = vadd.f32 %v54, %v131
  %v133 = vpop.f32.mrb[0].mxu0
  %v134 = vpop.f32.mrb[0].mxu0
  %v135 = vadd.f32 %v54, %v134
  %v136 = vpop.f32.mrb[0].mxu0
  %137 = vmatprep.mubr.bf16.mxu0 0
  %138 = vmatmul.mubr.bf16.gmra.mrb[0].mxu0 %v79
  %v139 = vpop.f32.mrb[0].mxu0
  %v140 = vadd.f32 %v54, %v139
  %v141 = vpop.f32.mrb[0].mxu0
  %v142 = vpop.f32.mrb[0].mxu0
  %v143 = vadd.f32 %v54, %v142
  %v144 = vpop.f32.mrb[0].mxu0
  %145 = vdwg.mxu0
  %v146 = vmax.f32 %v116, 0.0
  %v147 = vmax.f32 %v119, 0.0
  %v148 = vmax.f32 %v124, 0.0
  %v149 = vmax.f32 %v127, 0.0
  %v150 = vmax.f32 %v132, 0.0
  %v151 = vmax.f32 %v135, 0.0
  %v152 = vmax.f32 %v140, 0.0
  %v153 = vmax.f32 %v143, 0.0
  %v154 = vpack.c.bf16 %v147, %v146
  %v155 = vpack.c.bf16 %v149, %v148
  %v156 = vpack.c.bf16 %v151, %v150
  %v157 = vpack.c.bf16 %v153, %v152
  %v158 = vld [vmem:[%s3] sm:$0xf]
  %v159 = vld [vmem:[%s3 + $0x4] sm:$0xf]
  %v160 = vld [vmem:[%s3 + $0x8] sm:$0xf]
  %v161 = vld [vmem:[%s3 + $0xc] sm:$0xf]
  %v162 = vld [vmem:[%s3 + $0x10] sm:$0xf]
  %v163 = vld [vmem:[%s3 + $0x14] sm:$0xf]
  %v164 = vld [vmem:[%s3 + $0x18] sm:$0xf]
  %v165 = vld [vmem:[%s3 + $0x1c] sm:$0xf]
  %v166 = vld [vmem:[%s3 + $0x20] sm:$0xf]
  %v167 = vld [vmem:[%s3 + $0x24] sm:$0xf]
  %v168 = vld [vmem:[%s3 + $0x28] sm:$0xf]
  %v169 = vld [vmem:[%s3 + $0x2c] sm:$0xf]
  %v170 = vld [vmem:[%s3 + $0x30] sm:$0xf]
  %v171 = vld [vmem:[%s3 + $0x34] sm:$0xf]
  %v172 = vld [vmem:[%s3 + $0x38] sm:$0xf]
  %v173 = vld [vmem:[%s3 + $0x3c] sm:$0xf]
  %v174 = vld [vmem:[%s4] sm:$0x1]
  %v176 = vlaneseq
  %v177 = vshrl.u32 %v176, 7
  %v178 = vsub.s32 0, %v177
  %v179 = vrot.slane %v174, %v178
  %v197 = vunpack.c.l.b16 %v158
  %v198 = vunpack.c.l.b16 %v159
  %v199 = vunpack.c.l.b16 %v160
  %v200 = vunpack.c.l.b16 %v161
  %v201 = vunpack.c.l.b16 %v162
  %v202 = vunpack.c.l.b16 %v163
  %v203 = vunpack.c.l.b16 %v164
  %v204 = vunpack.c.l.b16 %v165
  %v205 = vunpack.c.l.b16 %v166
  %v206 = vunpack.c.l.b16 %v167
  %v207 = vunpack.c.l.b16 %v168
  %v208 = vunpack.c.l.b16 %v169
  %v209 = vunpack.c.l.b16 %v170
  %v210 = vunpack.c.l.b16 %v171
  %v211 = vunpack.c.l.b16 %v172
  %v212 = vunpack.c.l.b16 %v173
  %v213 = vpack.c.b16 %v198, %v197
  %v214 = vpack.c.b16 %v200, %v199
  %v215 = vpack.c.b16 %v202, %v201
  %v216 = vpack.c.b16 %v204, %v203
  %v217 = vpack.c.b16 %v206, %v205
  %v218 = vpack.c.b16 %v208, %v207
  %v219 = vpack.c.b16 %v210, %v209
  %v220 = vpack.c.b16 %v212, %v211
  %229 = vmatprep.subr.bf16.mxu0 0
  %230 = vmatpush1.bf16.msra.mxu0 %v213
  %231 = vmatprep.subr.bf16.mxu0 0
  %232 = vmatpush1.bf16.msra.mxu0 %v214
  %233 = vmatprep.subr.bf16.mxu0 0
  %234 = vmatpush1.bf16.msra.mxu0 %v215
  %235 = vmatprep.subr.bf16.mxu0 0
  %236 = vmatpush1.bf16.msra.mxu0 %v216
  %237 = vmatprep.subr.bf16.mxu0 0
  %238 = vmatpush1.bf16.msra.mxu0 %v217
  %239 = vmatprep.subr.bf16.mxu0 0
  %240 = vmatpush1.bf16.msra.mxu0 %v218
  %241 = vmatprep.subr.bf16.mxu0 0
  %242 = vmatpush1.bf16.msra.mxu0 %v219
  %243 = vmatprep.subr.bf16.mxu0 0
  %244 = vmatpush1.bf16.msra.mxu0 %v220
  %245 = vmatprep.subr.bf16.mxu0 0
  %246 = vmatpush1.bf16.msra.mxu0 0
  %247 = vmatprep.subr.bf16.mxu0 0
  %248 = vmatpush1.bf16.msra.mxu0 0
  %249 = vmatprep.subr.bf16.mxu0 0
  %250 = vmatpush1.bf16.msra.mxu0 0
  %251 = vmatprep.subr.bf16.mxu0 0
  %252 = vmatpush1.bf16.msra.mxu0 0
  %253 = vmatprep.subr.bf16.mxu0 0
  %254 = vmatpush1.bf16.msra.mxu0 0
  %255 = vmatprep.subr.bf16.mxu0 0
  %256 = vmatpush1.bf16.msra.mxu0 0
  %257 = vmatprep.subr.bf16.mxu0 0
  %258 = vmatpush1.bf16.msra.mxu0 0
  %259 = vmatprep.subr.bf16.mxu0 0
  %260 = vmatpush1.bf16.msra.mxu0 0
  %261 = vmatprep.mubr.bf16.mxu0 0
  %262 = vmatmul.mubr.bf16.gmra.mrb[0].mxu0 %v154
  %v263 = vpop.f32.mrb[0].mxu0
  %v264 = vadd.f32 %v179, %v263
  %v265 = vpop.f32.mrb[0].mxu0
  %v266 = vpop.f32.mrb[0].mxu0
  %v267 = vadd.f32 %v179, %v266
  %v268 = vpop.f32.mrb[0].mxu0
  %269 = vmatprep.mubr.bf16.mxu0 0
  %270 = vmatmul.mubr.bf16.gmra.mrb[0].mxu0 %v155
  %v271 = vpop.f32.mrb[0].mxu0
  %v272 = vadd.f32 %v179, %v271
  %v273 = vpop.f32.mrb[0].mxu0
  %v274 = vpop.f32.mrb[0].mxu0
  %v275 = vadd.f32 %v179, %v274
  %v276 = vpop.f32.mrb[0].mxu0
  %277 = vmatprep.mubr.bf16.mxu0 0
  %278 = vmatmul.mubr.bf16.gmra.mrb[0].mxu0 %v156
  %v279 = vpop.f32.mrb[0].mxu0
  %v280 = vadd.f32 %v179, %v279
  %v281 = vpop.f32.mrb[0].mxu0
  %v282 = vpop.f32.mrb[0].mxu0
  %v283 = vadd.f32 %v179, %v282
  %v284 = vpop.f32.mrb[0].mxu0
  %285 = vmatprep.mubr.bf16.mxu0 0
  %286 = vmatmul.mubr.bf16.gmra.mrb[0].mxu0 %v157
  %v287 = vpop.f32.mrb[0].mxu0
  %v288 = vadd.f32 %v179, %v287
  %v289 = vpop.f32.mrb[0].mxu0
  %v290 = vpop.f32.mrb[0].mxu0
  %v291 = vadd.f32 %v179, %v290
  %v292 = vpop.f32.mrb[0].mxu0
  %293 = vdwg.mxu0
  %v294 = vmax.f32 %v264, 0.0
  %v295 = vmax.f32 %v267, 0.0
  %v296 = vmax.f32 %v272, 0.0
  %v297 = vmax.f32 %v275, 0.0
  %v298 = vmax.f32 %v280, 0.0
  %v299 = vmax.f32 %v283, 0.0
  %v300 = vmax.f32 %v288, 0.0
  %v301 = vmax.f32 %v291, 0.0
  %v302 = vpack.c.bf16 %v295, %v294
  %v303 = vpack.c.bf16 %v297, %v296
  %v304 = vpack.c.bf16 %v299, %v298
  %v305 = vpack.c.bf16 %v301, %v300
  %v306 = vld [vmem:[%s5] sm:$0xf]
  %v307 = vld [vmem:[%s5 + $0x4] sm:$0xf]
  %v308 = vld [vmem:[%s5 + $0x8] sm:$0xf]
  %v309 = vld [vmem:[%s5 + $0xc] sm:$0xf]
  %v310 = vld [vmem:[%s5 + $0x10] sm:$0xf]
  %v311 = vld [vmem:[%s5 + $0x14] sm:$0xf]
  %v312 = vld [vmem:[%s5 + $0x18] sm:$0xf]
  %v313 = vld [vmem:[%s5 + $0x1c] sm:$0xf]
  %v314 = vld [vmem:[%s5 + $0x20] sm:$0xf]
  %v315 = vld [vmem:[%s5 + $0x24] sm:$0xf]
  %v316 = vld [vmem:[%s5 + $0x28] sm:$0xf]
  %v317 = vld [vmem:[%s5 + $0x2c] sm:$0xf]
  %v318 = vld [vmem:[%s5 + $0x30] sm:$0xf]
  %v319 = vld [vmem:[%s5 + $0x34] sm:$0xf]
  %v320 = vld [vmem:[%s5 + $0x38] sm:$0xf]
  %v321 = vld [vmem:[%s5 + $0x3c] sm:$0xf]
  %v322 = vld [vmem:[%s6] sm:$0x1]
  %v324 = vlaneseq
  %v325 = vshrl.u32 %v324, 7
  %v326 = vsub.s32 0, %v325
  %v327 = vrot.slane %v322, %v326
  %v345 = vunpack.c.l.b16 %v306
  %v346 = vunpack.c.l.b16 %v307
  %v347 = vunpack.c.l.b16 %v308
  %v348 = vunpack.c.l.b16 %v309
  %v349 = vunpack.c.l.b16 %v310
  %v350 = vunpack.c.l.b16 %v311
  %v351 = vunpack.c.l.b16 %v312
  %v352 = vunpack.c.l.b16 %v313
  %v353 = vunpack.c.l.b16 %v314
  %v354 = vunpack.c.l.b16 %v315
  %v355 = vunpack.c.l.b16 %v316
  %v356 = vunpack.c.l.b16 %v317
  %v357 = vunpack.c.l.b16 %v318
  %v358 = vunpack.c.l.b16 %v319
  %v359 = vunpack.c.l.b16 %v320
  %v360 = vunpack.c.l.b16 %v321
  %v361 = vpack.c.b16 %v346, %v345
  %v362 = vpack.c.b16 %v348, %v347
  %v363 = vpack.c.b16 %v350, %v349
  %v364 = vpack.c.b16 %v352, %v351
  %v365 = vpack.c.b16 %v354, %v353
  %v366 = vpack.c.b16 %v356, %v355
  %v367 = vpack.c.b16 %v358, %v357
  %v368 = vpack.c.b16 %v360, %v359
  %377 = vmatprep.subr.bf16.mxu0 0
  %378 = vmatpush1.bf16.msra.mxu0 %v361
  %379 = vmatprep.subr.bf16.mxu0 0
  %380 = vmatpush1.bf16.msra.mxu0 %v362
  %381 = vmatprep.subr.bf16.mxu0 0
  %382 = vmatpush1.bf16.msra.mxu0 %v363
  %383 = vmatprep.subr.bf16.mxu0 0
  %384 = vmatpush1.bf16.msra.mxu0 %v364
  %385 = vmatprep.subr.bf16.mxu0 0
  %386 = vmatpush1.bf16.msra.mxu0 %v365
  %387 = vmatprep.subr.bf16.mxu0 0
  %388 = vmatpush1.bf16.msra.mxu0 %v366
  %389 = vmatprep.subr.bf16.mxu0 0
  %390 = vmatpush1.bf16.msra.mxu0 %v367
  %391 = vmatprep.subr.bf16.mxu0 0
  %392 = vmatpush1.bf16.msra.mxu0 %v368
  %393 = vmatprep.subr.bf16.mxu0 0
  %394 = vmatpush1.bf16.msra.mxu0 0
  %395 = vmatprep.subr.bf16.mxu0 0
  %396 = vmatpush1.bf16.msra.mxu0 0
  %397 = vmatprep.subr.bf16.mxu0 0
  %398 = vmatpush1.bf16.msra.mxu0 0
  %399 = vmatprep.subr.bf16.mxu0 0
  %400 = vmatpush1.bf16.msra.mxu0 0
  %401 = vmatprep.subr.bf16.mxu0 0
  %402 = vmatpush1.bf16.msra.mxu0 0
  %403 = vmatprep.subr.bf16.mxu0 0
  %404 = vmatpush1.bf16.msra.mxu0 0
  %405 = vmatprep.subr.bf16.mxu0 0
  %406 = vmatpush1.bf16.msra.mxu0 0
  %407 = vmatprep.subr.bf16.mxu0 0
  %408 = vmatpush1.bf16.msra.mxu0 0
  %409 = vmatprep.mubr.bf16.mxu0 0
  %410 = vmatmul.mubr.bf16.gmra.mrb[0].mxu0 %v302
  %v411 = vpop.f32.mrb[0].mxu0
  %v412 = vadd.f32 %v327, %v411
  %v413 = vpop.f32.mrb[0].mxu0
  %v414 = vpop.f32.mrb[0].mxu0
  %v415 = vadd.f32 %v327, %v414
  %v416 = vpop.f32.mrb[0].mxu0
  %417 = vmatprep.mubr.bf16.mxu0 0
  %418 = vmatmul.mubr.bf16.gmra.mrb[0].mxu0 %v303
  %v419 = vpop.f32.mrb[0].mxu0
  %v420 = vadd.f32 %v327, %v419
  %v421 = vpop.f32.mrb[0].mxu0
  %v422 = vpop.f32.mrb[0].mxu0
  %v423 = vadd.f32 %v327, %v422
  %v424 = vpop.f32.mrb[0].mxu0
  %425 = vmatprep.mubr.bf16.mxu0 0
  %426 = vmatmul.mubr.bf16.gmra.mrb[0].mxu0 %v304
  %v427 = vpop.f32.mrb[0].mxu0
  %v428 = vadd.f32 %v327, %v427
  %v429 = vpop.f32.mrb[0].mxu0
  %v430 = vpop.f32.mrb[0].mxu0
  %v431 = vadd.f32 %v327, %v430
  %v432 = vpop.f32.mrb[0].mxu0
  %433 = vmatprep.mubr.bf16.mxu0 0
  %434 = vmatmul.mubr.bf16.gmra.mrb[0].mxu0 %v305
  %v435 = vpop.f32.mrb[0].mxu0
  %v436 = vadd.f32 %v327, %v435
  %v437 = vpop.f32.mrb[0].mxu0
  %v438 = vpop.f32.mrb[0].mxu0
  %v439 = vadd.f32 %v327, %v438
  %v440 = vpop.f32.mrb[0].mxu0
  %441 = vdwg.mxu0
  %v442 = vmax.f32 %v412, 0.0
  %v443 = vmax.f32 %v415, 0.0
  %v444 = vmax.f32 %v420, 0.0
  %v445 = vmax.f32 %v423, 0.0
  %v446 = vmax.f32 %v428, 0.0
  %v447 = vmax.f32 %v431, 0.0
  %v448 = vmax.f32 %v436, 0.0
  %v449 = vmax.f32 %v439, 0.0
  %v450 = vpack.c.bf16 %v443, %v442
  %v451 = vpack.c.bf16 %v445, %v444
  %v452 = vpack.c.bf16 %v447, %v446
  %v453 = vpack.c.bf16 %v449, %v448
  %v454 = vld [vmem:[%s7] sm:$0xf]
  %v455 = vld [vmem:[%s7 + $0x4] sm:$0xf]
  %v456 = vld [vmem:[%s7 + $0x8] sm:$0xf]
  %v457 = vld [vmem:[%s7 + $0xc] sm:$0xf]
  %v458 = vld [vmem:[%s7 + $0x10] sm:$0xf]
  %v459 = vld [vmem:[%s7 + $0x14] sm:$0xf]
  %v460 = vld [vmem:[%s7 + $0x18] sm:$0xf]
  %v461 = vld [vmem:[%s7 + $0x1c] sm:$0xf]
  %v462 = vld [vmem:[%s7 + $0x20] sm:$0xf]
  %v463 = vld [vmem:[%s7 + $0x24] sm:$0xf]
  %v464 = vld [vmem:[%s7 + $0x28] sm:$0xf]
  %v465 = vld [vmem:[%s7 + $0x2c] sm:$0xf]
  %v466 = vld [vmem:[%s7 + $0x30] sm:$0xf]
  %v467 = vld [vmem:[%s7 + $0x34] sm:$0xf]
  %v468 = vld [vmem:[%s7 + $0x38] sm:$0xf]
  %v469 = vld [vmem:[%s7 + $0x3c] sm:$0xf]
  %v470 = vld [vmem:[%s8] sm:$0x1]
  %v472 = vlaneseq
  %v473 = vshrl.u32 %v472, 7
  %v474 = vsub.s32 0, %v473
  %v475 = vrot.slane %v470, %v474
  %v493 = vunpack.c.l.b16 %v454
  %v494 = vunpack.c.l.b16 %v455
  %v495 = vunpack.c.l.b16 %v456
  %v496 = vunpack.c.l.b16 %v457
  %v497 = vunpack.c.l.b16 %v458
  %v498 = vunpack.c.l.b16 %v459
  %v499 = vunpack.c.l.b16 %v460
  %v500 = vunpack.c.l.b16 %v461
  %v501 = vunpack.c.l.b16 %v462
  %v502 = vunpack.c.l.b16 %v463
  %v503 = vunpack.c.l.b16 %v464
  %v504 = vunpack.c.l.b16 %v465
  %v505 = vunpack.c.l.b16 %v466
  %v506 = vunpack.c.l.b16 %v467
  %v507 = vunpack.c.l.b16 %v468
  %v508 = vunpack.c.l.b16 %v469
  %v509 = vpack.c.b16 %v494, %v493
  %v510 = vpack.c.b16 %v496, %v495
  %v511 = vpack.c.b16 %v498, %v497
  %v512 = vpack.c.b16 %v500, %v499
  %v513 = vpack.c.b16 %v502, %v501
  %v514 = vpack.c.b16 %v504, %v503
  %v515 = vpack.c.b16 %v506, %v505
  %v516 = vpack.c.b16 %v508, %v507
  %525 = vmatprep.subr.bf16.mxu0 0
  %526 = vmatpush1.bf16.msra.mxu0 %v509
  %527 = vmatprep.subr.bf16.mxu0 0
  %528 = vmatpush1.bf16.msra.mxu0 %v510
  %529 = vmatprep.subr.bf16.mxu0 0
  %530 = vmatpush1.bf16.msra.mxu0 %v511
  %531 = vmatprep.subr.bf16.mxu0 0
  %532 = vmatpush1.bf16.msra.mxu0 %v512
  %533 = vmatprep.subr.bf16.mxu0 0
  %534 = vmatpush1.bf16.msra.mxu0 %v513
  %535 = vmatprep.subr.bf16.mxu0 0
  %536 = vmatpush1.bf16.msra.mxu0 %v514
  %537 = vmatprep.subr.bf16.mxu0 0
  %538 = vmatpush1.bf16.msra.mxu0 %v515
  %539 = vmatprep.subr.bf16.mxu0 0
  %540 = vmatpush1.bf16.msra.mxu0 %v516
  %541 = vmatprep.subr.bf16.mxu0 0
  %542 = vmatpush1.bf16.msra.mxu0 0
  %543 = vmatprep.subr.bf16.mxu0 0
  %544 = vmatpush1.bf16.msra.mxu0 0
  %545 = vmatprep.subr.bf16.mxu0 0
  %546 = vmatpush1.bf16.msra.mxu0 0
  %547 = vmatprep.subr.bf16.mxu0 0
  %548 = vmatpush1.bf16.msra.mxu0 0
  %549 = vmatprep.subr.bf16.mxu0 0
  %550 = vmatpush1.bf16.msra.mxu0 0
  %551 = vmatprep.subr.bf16.mxu0 0
  %552 = vmatpush1.bf16.msra.mxu0 0
  %553 = vmatprep.subr.bf16.mxu0 0
  %554 = vmatpush1.bf16.msra.mxu0 0
  %555 = vmatprep.subr.bf16.mxu0 0
  %556 = vmatpush1.bf16.msra.mxu0 0
  %557 = vmatprep.mubr.bf16.mxu0 0
  %558 = vmatmul.mubr.bf16.gmra.mrb[0].mxu0 %v450
  %v559 = vpop.f32.mrb[0].mxu0
  %v560 = vadd.f32 %v475, %v559
  %v561 = vpop.f32.mrb[0].mxu0
  %v562 = vpop.f32.mrb[0].mxu0
  %v563 = vadd.f32 %v475, %v562
  %v564 = vpop.f32.mrb[0].mxu0
  %565 = vmatprep.mubr.bf16.mxu0 0
  %566 = vmatmul.mubr.bf16.gmra.mrb[0].mxu0 %v451
  %v567 = vpop.f32.mrb[0].mxu0
  %v568 = vadd.f32 %v475, %v567
  %v569 = vpop.f32.mrb[0].mxu0
  %v570 = vpop.f32.mrb[0].mxu0
  %v571 = vadd.f32 %v475, %v570
  %v572 = vpop.f32.mrb[0].mxu0
  %573 = vmatprep.mubr.bf16.mxu0 0
  %574 = vmatmul.mubr.bf16.gmra.mrb[0].mxu0 %v452
  %v575 = vpop.f32.mrb[0].mxu0
  %v576 = vadd.f32 %v475, %v575
  %v577 = vpop.f32.mrb[0].mxu0
  %v578 = vpop.f32.mrb[0].mxu0
  %v579 = vadd.f32 %v475, %v578
  %v580 = vpop.f32.mrb[0].mxu0
  %581 = vmatprep.mubr.bf16.mxu0 0
  %582 = vmatmul.mubr.bf16.gmra.mrb[0].mxu0 %v453
  %v583 = vpop.f32.mrb[0].mxu0
  %v584 = vadd.f32 %v475, %v583
  %v585 = vpop.f32.mrb[0].mxu0
  %v586 = vpop.f32.mrb[0].mxu0
  %v587 = vadd.f32 %v475, %v586
  %v588 = vpop.f32.mrb[0].mxu0
  %589 = vdwg.mxu0
  %vm590 = vcmask 64512
  %591 = vst.msk [vmem:[%s9] sm:$0xff] %vm590, %v560
  %592 = vst.msk [vmem:[%s9 + $0x8] sm:$0xff] %vm590, %v563
  %593 = vst.msk [vmem:[%s9 + $0x10] sm:$0xff] %vm590, %v568
  %594 = vst.msk [vmem:[%s9 + $0x18] sm:$0xff] %vm590, %v571
  %595 = vst.msk [vmem:[%s9 + $0x20] sm:$0xff] %vm590, %v576
  %596 = vst.msk [vmem:[%s9 + $0x28] sm:$0xff] %vm590, %v579
  %597 = vst.msk [vmem:[%s9 + $0x30] sm:$0xff] %vm590, %v584
  %598 = vst.msk [vmem:[%s9 + $0x38] sm:$0xff] %vm590, %v587
  // Predicated region
  $region38: #{tpu_custom_call.1} parent=0 // pred_check
    _
  $region39: #{tpu_custom_call.1} parent=0 // pred_check_branch
    %600 = sbr.rel (0) target = $region41
  $region40: #{tpu_custom_call.1} parent=0 // pred_region
    _
  $region41: #{tpu_custom_call.1} parent=0 // pred_fallthru
    _
  // Predicated region
  $region42: #{tpu_custom_call.1} parent=0 // pred_check
    _
  $region43: #{tpu_custom_call.1} parent=0 // pred_check_branch
    %602 = sbr.rel (0) target = $region45
  $region44: #{tpu_custom_call.1} parent=0 // pred_region
    _
  $region45: #{tpu_custom_call.1} parent=0 // pred_fallthru
    _

</llo_original>
